<compile_context>
chip_gen: v7x
topology: tpu7x:2x2x1
jax: 0.10.0
libtpu: 0.0.40
codegen_flags: <defaults>
</compile_context>

<pallas_src>
import functools

import jax
import jax.numpy as jnp
from jax.experimental import pallas as pl
from jax.experimental.pallas import tpu as pltpu


def _layernorm_kernel(x_ref, gamma_ref, beta_ref, o_ref, *, eps, d):
    # x_ref: (TB, D) lane-dense tile; gamma_ref / beta_ref: (1, D) f32.
    x = x_ref[...].astype(jnp.float32)
    # One-pass statistics (single sweep over the tile).
    s = jnp.sum(x, axis=-1, keepdims=True)                     # (TB, 1)
    ss = jnp.sum(x * x, axis=-1, keepdims=True)                # (TB, 1)
    mean = s * jnp.float32(1.0 / d)
    # torch.std default is unbiased (N-1); eps is added to std (outside sqrt),
    # matching the reference module exactly. Clamp >= 0 to guard the
    # E[x^2] - E[x]^2 cancellation when |mean| >> std.
    var = jnp.maximum((ss - s * mean) * jnp.float32(1.0 / (d - 1)), 0.0)
    inv = pl.reciprocal(jnp.sqrt(var) + jnp.float32(eps), approx=True)  # EUP slot
    scale = gamma_ref[...] * inv                               # (TB, D)
    bias = beta_ref[...] - mean * scale                        # (TB, D) FMA
    o_ref[...] = (x * scale + bias).astype(o_ref.dtype)        # single FMA + store


def _vmem_limit_bytes():
    """Generation-aware scoped-VMEM limit (~0.75x physical capacity)."""
    try:
        cap = int(pltpu.get_tpu_info().vmem_capacity_bytes)
    except Exception:
        cap = 64 << 20  # conservative fallback (v7x per-TC VMEM)
    if cap <= 0:
        cap = 64 << 20
    limit = (cap * 3) // 4
    return max(32 << 20, min(limit, 96 << 20))


def _choose_row_tile(batch, d, in_itemsize, out_itemsize, vmem_limit_bytes):
    """Row tile: multiple of 8, fits VMEM (incl. f32 temps), keeps >=8 grid steps."""
    # Per-row footprint: double-buffered input + output tiles plus ~4 f32
    # temporaries materialized in-kernel (x in f32, scale, bias, y).
    per_row = 2 * d * in_itemsize + 2 * d * out_itemsize + 4 * d * 4
    reserve = 4 * d * 4 + (1 << 20)            # gamma/beta (double-buffered) + slack
    budget = max(vmem_limit_bytes - reserve, per_row)
    tb = max(1, budget // per_row)
    # Keep tiles in the ~1-4 MiB streaming sweet spot so the grid has many
    # steps (DMA/compute overlap; shards across v7x's 2 TCs).
    tb = min(tb, max(1, (4 << 20) // max(1, d * in_itemsize)))
    # Aim for >= 8 grid steps whenever the batch allows it.
    if batch >= 64:
        tb = min(tb, batch // 8)
    if tb >= batch:
        return batch                           # tiny batch: one full-extent block
    # TODO(synk): add a feature-dim ("arbitrary") grid axis with partial-sum
    # accumulation for very large D where even 8 rows would overflow VMEM.
    return max(8, (tb // 8) * 8)               # TB % 8 == 0 required when TB < B


def layer_norm(x, gamma, beta, eps=1e-5, affine=True):
    """x: [B, C, H, W]; gamma/beta: [C]. Matches the PyTorch LayerNorm module."""
    B, C, H, W = x.shape
    D = C * H * W
    x2 = x.reshape(B, D)                       # lane-dense (rows x features)

    if affine:
        g = jnp.repeat(gamma.astype(jnp.float32), H * W).reshape(1, D)
        b = jnp.repeat(beta.astype(jnp.float32), H * W).reshape(1, D)
    else:
        g = jnp.ones((1, D), jnp.float32)
        b = jnp.zeros((1, D), jnp.float32)

    in_item = jnp.dtype(x.dtype).itemsize
    out_item = in_item
    vmem_limit = _vmem_limit_bytes()
    TB = _choose_row_tile(B, D, in_item, out_item, vmem_limit)
    grid = (pl.cdiv(B, TB),)

    kernel = functools.partial(_layernorm_kernel, eps=eps, d=D)

    cost = pl.CostEstimate(
        flops=7 * B * D,
        transcendentals=2 * B,
        bytes_accessed=B * D * (in_item + out_item) + 2 * D * 4,
    )

    out2 = pl.pallas_call(
        kernel,
        out_shape=jax.ShapeDtypeStruct((B, D), x.dtype),
        grid_spec=pltpu.PrefetchScalarGridSpec(
            num_scalar_prefetch=0,
            grid=grid,
            in_specs=[
                pl.BlockSpec((TB, D), lambda i: (i, 0)),   # TB rows per step
                pl.BlockSpec((1, D), lambda i: (0, 0)),    # gamma (shared)
                pl.BlockSpec((1, D), lambda i: (0, 0)),    # beta (shared)
            ],
            out_specs=pl.BlockSpec((TB, D), lambda i: (i, 0)),
        ),
        compiler_params=pltpu.CompilerParams(
            dimension_semantics=("parallel",),
            vmem_limit_bytes=vmem_limit,
        ),
        cost_estimate=cost,
    )(x2, g, b)

    return out2.reshape(B, C, H, W)


if __name__ == "__main__":
    key = jax.random.PRNGKey(0)
    kx, kg = jax.random.split(key)

    B, C, H, W = 2, 4, 16, 16
    x = jax.random.normal(kx, (B, C, H, W), dtype=jnp.float32)
    # deterministic params: gamma ~ uniform [0,1) (as torch .uniform_()), beta = zeros
    gamma = jax.random.uniform(kg, (C,), dtype=jnp.float32)
    beta = jnp.zeros((C,), jnp.float32)

    out = layer_norm(x, gamma, beta, eps=1e-5, affine=True)
    jax.block_until_ready(out)

    # pure-JAX reference (unbiased std, eps added to std, per-channel affine)
    xf = x.reshape(B, -1)
    mean = xf.mean(axis=1).reshape(B, 1, 1, 1)
    std = jnp.sqrt(((xf - xf.mean(axis=1, keepdims=True)) ** 2).sum(axis=1)
                   / (xf.shape[1] - 1)).reshape(B, 1, 1, 1)
    ref = (x - mean) / (std + 1e-5)
    ref = ref * gamma.reshape(1, C, 1, 1) + beta.reshape(1, C, 1, 1)
    # tolerance accounts for the EUP approximate reciprocal
    assert jnp.allclose(out, ref, atol=5e-3, rtol=5e-3)

    print("KERNEL_OK")
</pallas_src>

<mosaic_0001>
module attributes {stable_mosaic.version = 11 : i64} {
  func.func @_layernorm_kernel(%arg0: i32, %arg1: memref<2x1024xf32, #tpu.memory_space<vmem>>, %arg2: memref<1x1024xf32, #tpu.memory_space<vmem>>, %arg3: memref<1x1024xf32, #tpu.memory_space<vmem>>, %arg4: memref<2x1024xf32, #tpu.memory_space<vmem>>) attributes {dimension_semantics = [#tpu.dimension_semantics<parallel>], iteration_bounds = array<i64: 1>, scalar_prefetch = 0 : i64, scratch_operands = 0 : i64, tpu.core_type = #tpu.core_type<tc>, window_params = [{transform_indices = @transform_0, window_bounds = array<i64: 2, 1024>}, {pipeline_mode = #tpu.pipeline_mode<synchronous>, transform_indices = @transform_1, window_bounds = array<i64: 1, 1024>}, {pipeline_mode = #tpu.pipeline_mode<synchronous>, transform_indices = @transform_2, window_bounds = array<i64: 1, 1024>}, {transform_indices = @transform_3, window_bounds = array<i64: 2, 1024>}]} {
    %c0 = arith.constant 0 : index
    %c0_0 = arith.constant 0 : index
    %0 = vector.load %arg1[%c0, %c0_0] : memref<2x1024xf32, #tpu.memory_space<vmem>>, vector<2x1024xf32>
    %cst = arith.constant dense<0.000000e+00> : vector<2xf32>
    %1 = vector.multi_reduction <add>, %0, %cst [1] : vector<2x1024xf32> to vector<2xf32>
    %2 = vector.shape_cast %1 : vector<2xf32> to vector<2x1xf32>
    %3 = arith.mulf %0, %0 : vector<2x1024xf32>
    %cst_1 = arith.constant dense<0.000000e+00> : vector<2xf32>
    %4 = vector.multi_reduction <add>, %3, %cst_1 [1] : vector<2x1024xf32> to vector<2xf32>
    %5 = vector.shape_cast %4 : vector<2xf32> to vector<2x1xf32>
    %cst_2 = arith.constant 9.765625E-4 : f32
    %6 = vector.broadcast %cst_2 : f32 to vector<2x1xf32>
    %7 = arith.mulf %2, %6 : vector<2x1xf32>
    %8 = arith.mulf %2, %7 : vector<2x1xf32>
    %9 = arith.subf %5, %8 : vector<2x1xf32>
    %cst_3 = arith.constant 9.77517105E-4 : f32
    %10 = vector.broadcast %cst_3 : f32 to vector<2x1xf32>
    %11 = arith.mulf %9, %10 : vector<2x1xf32>
    %cst_4 = arith.constant 0.000000e+00 : f32
    %12 = vector.broadcast %cst_4 : f32 to vector<2x1xf32>
    %13 = arith.maximumf %11, %12 : vector<2x1xf32>
    %14 = math.sqrt %13 : vector<2x1xf32>
    %cst_5 = arith.constant 9.99999974E-6 : f32
    %15 = vector.broadcast %cst_5 : f32 to vector<2x1xf32>
    %16 = arith.addf %14, %15 : vector<2x1xf32>
    %17 = tpu.reciprocal %16 {approx = true} : vector<2x1xf32> -> vector<2x1xf32>
    %c0_6 = arith.constant 0 : index
    %c0_7 = arith.constant 0 : index
    %18 = vector.load %arg2[%c0_6, %c0_7] : memref<1x1024xf32, #tpu.memory_space<vmem>>, vector<1x1024xf32>
    %19 = vector.broadcast %18 : vector<1x1024xf32> to vector<2x1024xf32>
    %20 = vector.broadcast %17 : vector<2x1xf32> to vector<2x1024xf32>
    %21 = arith.mulf %19, %20 : vector<2x1024xf32>
    %c0_8 = arith.constant 0 : index
    %c0_9 = arith.constant 0 : index
    %22 = vector.load %arg3[%c0_8, %c0_9] : memref<1x1024xf32, #tpu.memory_space<vmem>>, vector<1x1024xf32>
    %23 = vector.broadcast %7 : vector<2x1xf32> to vector<2x1024xf32>
    %24 = arith.mulf %23, %21 : vector<2x1024xf32>
    %25 = vector.broadcast %22 : vector<1x1024xf32> to vector<2x1024xf32>
    %26 = arith.subf %25, %24 : vector<2x1024xf32>
    %27 = arith.mulf %0, %21 : vector<2x1024xf32>
    %28 = arith.addf %27, %26 : vector<2x1024xf32>
    %c0_10 = arith.constant 0 : index
    %c0_11 = arith.constant 0 : index
    %29 = vector.load %arg4[%c0_10, %c0_11] : memref<2x1024xf32, #tpu.memory_space<vmem>>, vector<2x1024xf32>
    tpu.vector_store %arg4[%c0_10, %c0_11], %28 {strides = array<i32>} : memref<2x1024xf32, #tpu.memory_space<vmem>>, vector<2x1024xf32>,
    return
  }
  func.func @transform_0(%arg0: i32) -> (i32, i32) {
    %c0_i32 = arith.constant 0 : i32
    %c0_i32_0 = arith.constant 0 : i32
    return %arg0, %c0_i32 : i32, i32
  }
  func.func @transform_1(%arg0: i32) -> (i32, i32) {
    %c0_i32 = arith.constant 0 : i32
    %c0_i32_0 = arith.constant 0 : i32
    %c0_i32_1 = arith.constant 0 : i32
    return %c0_i32, %c0_i32_0 : i32, i32
  }
  func.func @transform_2(%arg0: i32) -> (i32, i32) {
    %c0_i32 = arith.constant 0 : i32
    %c0_i32_0 = arith.constant 0 : i32
    %c0_i32_1 = arith.constant 0 : i32
    return %c0_i32, %c0_i32_0 : i32, i32
  }
  func.func @transform_3(%arg0: i32) -> (i32, i32) {
    %c0_i32 = arith.constant 0 : i32
    %c0_i32_0 = arith.constant 0 : i32
    return %arg0, %c0_i32 : i32, i32
  }
}

</mosaic_0001>

<llo_original>
// kernel: tpu_custom_call.1
$region0: #{tpu_custom_call.1}
  #allocation0 [shape = 'u32[]', space=smem, size = 0x4, offset = 0x4, fixed_abs, tag = 'smem constant byte address 0x4 - core index']
  #allocation1 [shape = 'u32[144,128]{1,0:T(1,128)}', space=vmem, size = 0x12000, scoped, tag = 'internal scratch']
  %s0 = inlined_call_operand.hbm [shape: f32[2,1024], index: 0, kind: input, shape index: {}]
  %s1 = inlined_call_operand.hbm [shape: f32[1,1024], index: 1, kind: input, shape index: {}]
  %s2 = inlined_call_operand.hbm [shape: f32[1,1024], index: 2, kind: input, shape index: {}]
  %s3 = inlined_call_operand.hbm [shape: f32[2,1024], index: 3, kind: output, shape index: {}]
  %s4 = sld [smem:[#allocation0]]
  $region34: #{tpu_custom_call.1} parent=0
    _
  %s6 = ssub.s32 1, %s4
  %s7 = scalar_select 0, %s6, %s4
  $region1: #{tpu_custom_call.1} parent=0
    #allocation2 [shape = 'u8[8192]{0}', space=vmem, size = 0x2000, scoped, tag = 'input window, operand 0, single buffered']
    #allocation3 [shape = 's32[1]{0}', space=sflag, size = 0x4, scoped, tag = 'scoped memory for tpu_custom_call.1']
    #allocation4 [shape = 's32[1]{0}', space=sflag, size = 0x4, scoped, tag = 'scoped memory for tpu_custom_call.1']
    #allocation5 [shape = 'u8[4096]{0}', space=vmem, size = 0x1000, scoped, tag = 'input window, operand 1, single buffered']
    #allocation6 [shape = 's32[1]{0}', space=sflag, size = 0x4, scoped, tag = 'scoped memory for tpu_custom_call.1']
    #allocation7 [shape = 'u8[4096]{0}', space=vmem, size = 0x1000, scoped, tag = 'input window, operand 2, single buffered']
    #allocation8 [shape = 'u8[8192]{0}', space=vmem, size = 0x2000, scoped, tag = 'output window, operand 0, single buffered']
    %8 = vsyncpa [#allocation3], 0
    %9 = vsyncpa [#allocation6], 0
    %10 = vsyncpa [#allocation4], 0
    // Predicated region
    $region2: #{tpu_custom_call.1} parent=1 // pred_check
      _
    $region3: #{tpu_custom_call.1} parent=1 // pred_check_branch
      %12 = sbr.rel (0) target = $region5
    $region4: #{tpu_custom_call.1} parent=1 // pred_region
      %s14 = ssub.s32 256, 256
      %15 = vsyncadd [#allocation3], %s14
      %s17 = sshll.u32 [#allocation2], 4
      %s18 = int_to_ptr.vmem [resolvable:$true] %s17
      %20 = dma.hbm_to_vmem [thread:$0]  %s0, 256, %s18, [#allocation3]
    $region5: #{tpu_custom_call.1} parent=1 // pred_fallthru
      _
    // Predicated region
    $region6: #{tpu_custom_call.1} parent=1 // pred_check
      _
    $region7: #{tpu_custom_call.1} parent=1 // pred_check_branch
      %22 = sbr.rel (0) target = $region9
    $region8: #{tpu_custom_call.1} parent=1 // pred_region
      %s24 = ssub.s32 128, 128
      %25 = vsyncadd [#allocation6], %s24
      %s27 = sshll.u32 [#allocation5], 4
      %s28 = int_to_ptr.vmem [resolvable:$true] %s27
      %30 = dma.hbm_to_vmem [thread:$0]  %s1, 128, %s28, [#allocation6]
    $region9: #{tpu_custom_call.1} parent=1 // pred_fallthru
      _
    // Predicated region
    $region10: #{tpu_custom_call.1} parent=1 // pred_check
      _
    $region11: #{tpu_custom_call.1} parent=1 // pred_check_branch
      %32 = sbr.rel (0) target = $region13
    $region12: #{tpu_custom_call.1} parent=1 // pred_region
      %s34 = ssub.s32 128, 128
      %35 = vsyncadd [#allocation6], %s34
      %s37 = sshll.u32 [#allocation7], 4
      %s38 = int_to_ptr.vmem [resolvable:$true] %s37
      %40 = dma.hbm_to_vmem [thread:$0]  %s2, 128, %s38, [#allocation6]
    $region13: #{tpu_custom_call.1} parent=1 // pred_fallthru
      _
    // Predicated region
    $region14: #{tpu_custom_call.1} parent=1 // pred_check
      _
    $region15: #{tpu_custom_call.1} parent=1 // pred_check_branch
      %42 = sbr.rel (0) target = $region17
    $region16: #{tpu_custom_call.1} parent=1 // pred_region
      %43 = dma.done [#allocation3], 256
    $region17: #{tpu_custom_call.1} parent=1 // pred_fallthru
      _
    // Predicated region
    $region18: #{tpu_custom_call.1} parent=1 // pred_check
      _
    $region19: #{tpu_custom_call.1} parent=1 // pred_check_branch
      %45 = sbr.rel (0) target = $region21
    $region20: #{tpu_custom_call.1} parent=1 // pred_region
      %46 = dma.done [#allocation6], 128
    $region21: #{tpu_custom_call.1} parent=1 // pred_fallthru
      _
    // Predicated region
    $region22: #{tpu_custom_call.1} parent=1 // pred_check
      _
    $region23: #{tpu_custom_call.1} parent=1 // pred_check_branch
      %48 = sbr.rel (0) target = $region25
    $region24: #{tpu_custom_call.1} parent=1 // pred_region
      %49 = dma.done [#allocation6], 128
    $region25: #{tpu_custom_call.1} parent=1 // pred_fallthru
      _
    %v50 = vld [vmem:[#allocation2] sm:$0xff]
    %v51 = vld [vmem:[#allocation2 + $0x8] sm:$0xff]
    %v54 = vcombine.high %v50, %v50
    %v56 = vunpack.c.l.s4 1983009808
    %v57 = vunpack.c.0.s8 %v56
    %v58 = vlaneseq
    %v59 = vshrl.u32 %v58, 7
    %v60 = vsub.s32 %v57, %v59
    %v61 = vrot.slane %v50, %v60
    %v63 = vunpack.c.l.s4 1983009808
    %v64 = vunpack.c.0.s8 %v63
    %v65 = vlaneseq
    %v66 = vshrl.u32 %v65, 7
    %v67 = vsub.s32 %v64, %v66
    %v68 = vrot.slane %v54, %v67
    %v69 = vcombine.high %v61, %v61
    %v70 = vcombine.high %v68, %v68
    %v71 = vcombine.high %v51, %v51
    %v73 = vunpack.c.l.s4 1983009808
    %v74 = vunpack.c.0.s8 %v73
    %v75 = vlaneseq
    %v76 = vshrl.u32 %v75, 7
    %v77 = vsub.s32 %v74, %v76
    %v78 = vrot.slane %v51, %v77
    %v80 = vunpack.c.l.s4 1983009808
    %v81 = vunpack.c.0.s8 %v80
    %v82 = vlaneseq
    %v83 = vshrl.u32 %v82, 7
    %v84 = vsub.s32 %v81, %v83
    %v85 = vrot.slane %v71, %v84
    %v86 = vcombine.high %v78, %v78
    %v87 = vcombine.high %v85, %v85
    %vm96 = vcmask 1041408
    %v97 = vsel %vm96, %v61, 0.0
    %v98 = vsel %vm96, %v69, 0.0
    %v99 = vadd.f32 %v97, %v98
    %v100 = vsel %vm96, %v68, 0.0
    %v101 = vadd.f32 %v99, %v100
    %v102 = vsel %vm96, %v70, 0.0
    %v103 = vadd.f32 %v101, %v102
    %v104 = vsel %vm96, %v78, 0.0
    %v105 = vadd.f32 %v103, %v104
    %v106 = vsel %vm96, %v86, 0.0
    %v107 = vadd.f32 %v105, %v106
    %v108 = vsel %vm96, %v85, 0.0
    %v109 = vadd.f32 %v107, %v108
    %v110 = vsel %vm96, %v87, 0.0
    %v111 = vadd.f32 %v109, %v110
    %112 = vadd.xlane.f32.xlu0 %v111
    %v113 = vpop.xlane.xlu0 %112
    %v114 = vmul.f32 %v50, %v50
    %v115 = vmul.f32 %v51, %v51
    %v118 = vcombine.high %v114, %v114
    %v120 = vunpack.c.l.s4 1983009808
    %v121 = vunpack.c.0.s8 %v120
    %v122 = vlaneseq
    %v123 = vshrl.u32 %v122, 7
    %v124 = vsub.s32 %v121, %v123
    %v125 = vrot.slane %v114, %v124
    %v127 = vunpack.c.l.s4 1983009808
    %v128 = vunpack.c.0.s8 %v127
    %v129 = vlaneseq
    %v130 = vshrl.u32 %v129, 7
    %v131 = vsub.s32 %v128, %v130
    %v132 = vrot.slane %v118, %v131
    %v133 = vcombine.high %v125, %v125
    %v134 = vcombine.high %v132, %v132
    %v135 = vcombine.high %v115, %v115
    %v137 = vunpack.c.l.s4 1983009808
    %v138 = vunpack.c.0.s8 %v137
    %v139 = vlaneseq
    %v140 = vshrl.u32 %v139, 7
    %v141 = vsub.s32 %v138, %v140
    %v142 = vrot.slane %v115, %v141
    %v144 = vunpack.c.l.s4 1983009808
    %v145 = vunpack.c.0.s8 %v144
    %v146 = vlaneseq
    %v147 = vshrl.u32 %v146, 7
    %v148 = vsub.s32 %v145, %v147
    %v149 = vrot.slane %v135, %v148
    %v150 = vcombine.high %v142, %v142
    %v151 = vcombine.high %v149, %v149
    %v160 = vsel %vm96, %v125, 0.0
    %v161 = vsel %vm96, %v133, 0.0
    %v162 = vadd.f32 %v160, %v161
    %v163 = vsel %vm96, %v132, 0.0
    %v164 = vadd.f32 %v162, %v163
    %v165 = vsel %vm96, %v134, 0.0
    %v166 = vadd.f32 %v164, %v165
    %v167 = vsel %vm96, %v142, 0.0
    %v168 = vadd.f32 %v166, %v167
    %v169 = vsel %vm96, %v150, 0.0
    %v170 = vadd.f32 %v168, %v169
    %v171 = vsel %vm96, %v149, 0.0
    %v172 = vadd.f32 %v170, %v171
    %v173 = vsel %vm96, %v151, 0.0
    %v174 = vadd.f32 %v172, %v173
    %175 = vadd.xlane.f32.xlu0 %v174
    %v176 = vpop.xlane.xlu0 %175
    %v177 = vmul.f32 %v113, 0.0009765625
    %v178 = vmul.f32 %v113, %v177
    %v179 = vsub.f32 %v176, %v178
    %v180 = vmul.f32 %v179, 0.0009775171
    %v181 = vmax.f32 %v180, 0.0
    %v182 = vrsqrt.pop %v181
    %v183 = vmul.f32 %v181, %v182
    %vm184 = vcmp.eq.f32.partialorder %v181, inf
    %v185 = vsel %vm184, %v181, %v183
    %vm186 = vcmp.eq.f32.partialorder %v181, 0.0
    %v187 = vand.u32 %v181, 2147483648
    %v188 = vsel %vm186, %v187, %v185
    %v189 = vadd.f32 %v188, 1e-05
    %v190 = vrcp.pop %v189
    %v191 = vld [vmem:[#allocation5] sm:$0xff]
    %v193 = vlaneseq
    %v194 = vshrl.u32 %v193, 7
    %v195 = vsub.s32 0, %v194
    %v196 = vrot.slane %v191, %v195
    %v197 = vlaneseq
    %v198 = vshrl.u32 %v197, 7
    %v199 = vsub.s32 1, %v198
    %v200 = vrot.slane %v191, %v199
    %v201 = vlaneseq
    %v202 = vshrl.u32 %v201, 7
    %v203 = vsub.s32 2, %v202
    %v204 = vrot.slane %v191, %v203
    %v205 = vlaneseq
    %v206 = vshrl.u32 %v205, 7
    %v207 = vsub.s32 3, %v206
    %v208 = vrot.slane %v191, %v207
    %v209 = vlaneseq
    %v210 = vshrl.u32 %v209, 7
    %v211 = vsub.s32 4, %v210
    %v212 = vrot.slane %v191, %v211
    %v213 = vlaneseq
    %v214 = vshrl.u32 %v213, 7
    %v215 = vsub.s32 5, %v214
    %v216 = vrot.slane %v191, %v215
    %v217 = vlaneseq
    %v218 = vshrl.u32 %v217, 7
    %v219 = vsub.s32 6, %v218
    %v220 = vrot.slane %v191, %v219
    %v221 = vlaneseq
    %v222 = vshrl.u32 %v221, 7
    %v223 = vsub.s32 7, %v222
    %v224 = vrot.slane %v191, %v223
    %v233 = vmul.f32 %v196, %v190
    %v234 = vmul.f32 %v200, %v190
    %v235 = vmul.f32 %v204, %v190
    %v236 = vmul.f32 %v208, %v190
    %v237 = vmul.f32 %v212, %v190
    %v238 = vmul.f32 %v216, %v190
    %v239 = vmul.f32 %v220, %v190
    %v240 = vmul.f32 %v224, %v190
    %v241 = vld [vmem:[#allocation7] sm:$0xff]
    %v242 = vmul.f32 %v177, %v233
    %v243 = vmul.f32 %v177, %v234
    %v244 = vmul.f32 %v177, %v235
    %v245 = vmul.f32 %v177, %v236
    %v246 = vmul.f32 %v177, %v237
    %v247 = vmul.f32 %v177, %v238
    %v248 = vmul.f32 %v177, %v239
    %v249 = vmul.f32 %v177, %v240
    %v251 = vlaneseq
    %v252 = vshrl.u32 %v251, 7
    %v253 = vsub.s32 0, %v252
    %v254 = vrot.slane %v241, %v253
    %v255 = vlaneseq
    %v256 = vshrl.u32 %v255, 7
    %v257 = vsub.s32 1, %v256
    %v258 = vrot.slane %v241, %v257
    %v259 = vlaneseq
    %v260 = vshrl.u32 %v259, 7
    %v261 = vsub.s32 2, %v260
    %v262 = vrot.slane %v241, %v261
    %v263 = vlaneseq
    %v264 = vshrl.u32 %v263, 7
    %v265 = vsub.s32 3, %v264
    %v266 = vrot.slane %v241, %v265
    %v267 = vlaneseq
    %v268 = vshrl.u32 %v267, 7
    %v269 = vsub.s32 4, %v268
    %v270 = vrot.slane %v241, %v269
    %v271 = vlaneseq
    %v272 = vshrl.u32 %v271, 7
    %v273 = vsub.s32 5, %v272
    %v274 = vrot.slane %v241, %v273
    %v275 = vlaneseq
    %v276 = vshrl.u32 %v275, 7
    %v277 = vsub.s32 6, %v276
    %v278 = vrot.slane %v241, %v277
    %v279 = vlaneseq
    %v280 = vshrl.u32 %v279, 7
    %v281 = vsub.s32 7, %v280
    %v282 = vrot.slane %v241, %v281
    %v291 = vsub.f32 %v254, %v242
    %v292 = vsub.f32 %v258, %v243
    %v293 = vsub.f32 %v262, %v244
    %v294 = vsub.f32 %v266, %v245
    %v295 = vsub.f32 %v270, %v246
    %v296 = vsub.f32 %v274, %v247
    %v297 = vsub.f32 %v278, %v248
    %v298 = vsub.f32 %v282, %v249
    %v307 = vcombine.low %v233, %v234
    %v308 = vcombine.low %v235, %v236
    %v310 = vunpack.c.l.s4 1983009808
    %v311 = vunpack.c.0.s8 %v310
    %v312 = vlaneseq
    %v313 = vshrl.u32 %v312, 7
    %v314 = vsub.s32 %v311, %v313
    %v315 = vrot.slane %v307, %v314
    %v317 = vunpack.c.l.s4 1983009808
    %v318 = vunpack.c.0.s8 %v317
    %v319 = vlaneseq
    %v320 = vshrl.u32 %v319, 7
    %v321 = vsub.s32 %v318, %v320
    %v322 = vrot.slane %v308, %v321
    %v323 = vcombine.low %v315, %v322
    %v324 = vcombine.low %v237, %v238
    %v325 = vcombine.low %v239, %v240
    %v327 = vunpack.c.l.s4 1983009808
    %v328 = vunpack.c.0.s8 %v327
    %v329 = vlaneseq
    %v330 = vshrl.u32 %v329, 7
    %v331 = vsub.s32 %v328, %v330
    %v332 = vrot.slane %v324, %v331
    %v334 = vunpack.c.l.s4 1983009808
    %v335 = vunpack.c.0.s8 %v334
    %v336 = vlaneseq
    %v337 = vshrl.u32 %v336, 7
    %v338 = vsub.s32 %v335, %v337
    %v339 = vrot.slane %v325, %v338
    %v340 = vcombine.low %v332, %v339
    %v343 = vmul.f32 %v50, %v323
    %v344 = vmul.f32 %v51, %v340
    %v353 = vcombine.low %v291, %v292
    %v354 = vcombine.low %v293, %v294
    %v356 = vunpack.c.l.s4 1983009808
    %v357 = vunpack.c.0.s8 %v356
    %v358 = vlaneseq
    %v359 = vshrl.u32 %v358, 7
    %v360 = vsub.s32 %v357, %v359
    %v361 = vrot.slane %v353, %v360
    %v363 = vunpack.c.l.s4 1983009808
    %v364 = vunpack.c.0.s8 %v363
    %v365 = vlaneseq
    %v366 = vshrl.u32 %v365, 7
    %v367 = vsub.s32 %v364, %v366
    %v368 = vrot.slane %v354, %v367
    %v369 = vcombine.low %v361, %v368
    %v370 = vcombine.low %v295, %v296
    %v371 = vcombine.low %v297, %v298
    %v373 = vunpack.c.l.s4 1983009808
    %v374 = vunpack.c.0.s8 %v373
    %v375 = vlaneseq
    %v376 = vshrl.u32 %v375, 7
    %v377 = vsub.s32 %v374, %v376
    %v378 = vrot.slane %v370, %v377
    %v380 = vunpack.c.l.s4 1983009808
    %v381 = vunpack.c.0.s8 %v380
    %v382 = vlaneseq
    %v383 = vshrl.u32 %v382, 7
    %v384 = vsub.s32 %v381, %v383
    %v385 = vrot.slane %v371, %v384
    %v386 = vcombine.low %v378, %v385
    %v389 = vadd.f32 %v343, %v369
    %v390 = vadd.f32 %v344, %v386
    %391 = vst [vmem:[#allocation8] sm:$0xff] %v389
    %392 = vst [vmem:[#allocation8 + $0x8] sm:$0xff] %v390
    // Predicated region
    $region26: #{tpu_custom_call.1} parent=1 // pred_check
      _
    $region27: #{tpu_custom_call.1} parent=1 // pred_check_branch
      %394 = sbr.rel (0) target = $region29
    $region28: #{tpu_custom_call.1} parent=1 // pred_region
      %s396 = ssub.s32 256, 256
      %397 = vsyncadd [#allocation4], %s396
      %s399 = sshll.u32 [#allocation8], 4
      %s400 = int_to_ptr.vmem [resolvable:$true] %s399
      %402 = dma.vmem_to_hbm [thread:$0]  %s400, 256, %s3, [#allocation4]
    $region29: #{tpu_custom_call.1} parent=1 // pred_fallthru
      _
    // Predicated region
    $region30: #{tpu_custom_call.1} parent=1 // pred_check
      _
    $region31: #{tpu_custom_call.1} parent=1 // pred_check_branch
      %404 = sbr.rel (0) target = $region33
    $region32: #{tpu_custom_call.1} parent=1 // pred_region
      %405 = dma.done [#allocation4], 256
    $region33: #{tpu_custom_call.1} parent=1 // pred_fallthru
      _
    %406 = vsyncpa [#allocation3], 1
    %407 = vsyncpa [#allocation6], 1
    %408 = vsyncpa [#allocation4], 1

</llo_original>
